<compile_context>
chip_gen: v5e
topology: v5e:2x2
jax: 0.10.0
libtpu: 0.0.40
codegen_flags: <defaults>
</compile_context>

<pallas_src>
import functools

import jax
import jax.numpy as jnp
from jax.experimental import pallas as pl
from jax.experimental.pallas import tpu as pltpu


def _encoder_kernel(x_ref, w1_ref, b1_ref, w2_ref, b2_ref, w3_ref, b3_ref,
                    o_ref):
    """Whole 3-layer MLP fused in one kernel body (runs per batch tile)."""
    x = x_ref[...]
    if x.dtype != jnp.float32:          # gate the cast; no-op cast removed
        x = x.astype(jnp.float32)

    # Layer 1: Linear + Tanh  (MXU matmul, VPU add, EUP tanh)
    h = jnp.dot(x, w1_ref[...], preferred_element_type=jnp.float32)
    h = jnp.tanh(h + b1_ref[...])

    # Layer 2: Linear + Tanh
    h = jnp.dot(h, w2_ref[...], preferred_element_type=jnp.float32)
    h = jnp.tanh(h + b2_ref[...])

    # Layer 3: Linear (no activation)
    out = jnp.dot(h, w3_ref[...], preferred_element_type=jnp.float32)
    out = out + b3_ref[...]

    o_ref[...] = out.astype(o_ref.dtype)


def _auto_tile_b(B, max_tile=2048):
    """Pick the largest batch tile: the whole batch when small, otherwise the
    biggest multiple-of-8 divisor of B that is <= max_tile.  Big tiles
    amortize the ~0.35 us per-grid-step pipeline overhead; for huge batches a
    multi-step 'parallel' grid also lets v7x's two TensorCores share work."""
    if B <= max_tile:
        return B
    t = (max_tile // 8) * 8
    while t >= 8:
        if B % t == 0:
            return t
        t -= 8
    return B  # fallback: single tile covering the whole batch


def _resident_spec(rows, cols):
    """BlockSpec for a grid-invariant operand (same block every step).
    Single-buffered: no point double-buffering something that never changes."""
    try:
        return pl.BlockSpec((rows, cols), lambda i: (0, 0),
                            pipeline_mode=pl.Buffered(1))
    except (TypeError, AttributeError):
        # Older jax without pipeline_mode / Buffered: fall back to default.
        return pl.BlockSpec((rows, cols), lambda i: (0, 0))


@functools.partial(jax.jit, static_argnames=("tile_b",))
def encoder_forward(state, params, *, tile_b=None):
    """Runs the fused Encoder MLP via a single pallas_call.

    state:  (B, state_dim) float32
    params: dict with w1 (S,H), b1 (1,H), w2 (H,H), b2 (1,H),
            w3 (H,E), b3 (1,E)
    tile_b: batch tile; None -> auto (whole batch when small).
    """
    w1, b1 = params["w1"], params["b1"]
    w2, b2 = params["w2"], params["b2"]
    w3, b3 = params["w3"], params["b3"]

    B, S = state.shape
    H = w1.shape[1]
    E = w3.shape[1]

    if tile_b is None:
        tile_b = _auto_tile_b(B)
    assert B % tile_b == 0, "batch must be divisible by tile_b"
    grid = (B // tile_b,)

    # --- advisory cost estimate for XLA's scheduler -------------------------
    flops = 2 * B * (S * H + H * H + H * E)
    transcendentals = 2 * B * H  # two tanh layers
    itemsize = jnp.dtype(state.dtype).itemsize
    weight_bytes = sum(int(a.size) * jnp.dtype(a.dtype).itemsize
                       for a in (w1, b1, w2, b2, w3, b3))
    bytes_accessed = (B * S + B * E) * itemsize + weight_bytes
    cost = pl.CostEstimate(flops=flops,
                           transcendentals=transcendentals,
                           bytes_accessed=bytes_accessed)

    # --- VMEM budgeting: only raise the scoped limit when actually needed ---
    # x/out tiles are double-buffered; weights are single-buffered.
    vmem_need = ((tile_b * S + tile_b * E) * itemsize * 2) + weight_bytes
    compiler_kwargs = dict(dimension_semantics=("parallel",))
    if vmem_need > (24 << 20):
        # Leave headroom under the physical caps (64 MiB v7x, 128 MiB v5e/v6e).
        compiler_kwargs["vmem_limit_bytes"] = min(int(vmem_need * 3 // 2),
                                                  60 << 20)
    compiler_params = pltpu.CompilerParams(**compiler_kwargs)

    out = pl.pallas_call(
        _encoder_kernel,
        out_shape=jax.ShapeDtypeStruct((B, E), state.dtype),
        grid_spec=pltpu.PrefetchScalarGridSpec(
            num_scalar_prefetch=0,
            grid=grid,
            in_specs=[
                pl.BlockSpec((tile_b, S), lambda i: (i, 0)),  # state tile
                _resident_spec(S, H),   # w1  (grid-invariant, single-buffered)
                _resident_spec(1, H),   # b1
                _resident_spec(H, H),   # w2
                _resident_spec(1, H),   # b2
                _resident_spec(H, E),   # w3
                _resident_spec(1, E),   # b3
            ],
            out_specs=pl.BlockSpec((tile_b, E), lambda i: (i, 0)),
        ),
        compiler_params=compiler_params,
        cost_estimate=cost,
    )(state, w1, b1, w2, b2, w3, b3)
    return out


def init_encoder_params(key, state_dim, hidden_dim, emb_dim,
                        dtype=jnp.float32):
    """Deterministic init mirroring nn.Linear's U(-1/sqrt(fan_in), +1/sqrt(fan_in))."""
    ks = jax.random.split(key, 6)

    def linear(kw, kb, fan_in, fan_out):
        bound = 1.0 / jnp.sqrt(jnp.asarray(fan_in, dtype))
        w = jax.random.uniform(kw, (fan_in, fan_out), dtype, -bound, bound)
        b = jax.random.uniform(kb, (1, fan_out), dtype, -bound, bound)
        return w, b

    w1, b1 = linear(ks[0], ks[1], state_dim, hidden_dim)
    w2, b2 = linear(ks[2], ks[3], hidden_dim, hidden_dim)
    w3, b3 = linear(ks[4], ks[5], hidden_dim, emb_dim)
    return {"w1": w1, "b1": b1, "w2": w2, "b2": b2, "w3": w3, "b3": b3}


def encoder_ref(state, params):
    """Pure-JAX reference (mirrors the PyTorch forward)."""
    h = jnp.tanh(state @ params["w1"] + params["b1"])
    h = jnp.tanh(h @ params["w2"] + params["b2"])
    return h @ params["w3"] + params["b3"]


if __name__ == "__main__":
    # Small shapes consistent with the module: MuJoCo-ish state dim, small MLP.
    batch = 16
    state_dim = 17          # e.g. HalfCheetah observation dim
    hidden_dim = 32
    state_emb_dim = 8

    key = jax.random.PRNGKey(0)
    k_params, k_state = jax.random.split(key)

    params = init_encoder_params(k_params, state_dim, hidden_dim,
                                 state_emb_dim)
    state = jax.random.normal(k_state, (batch, state_dim), dtype=jnp.float32)

    # Auto tile -> whole batch in one tile, grid=(1,): a single kernel
    # invocation with no per-step pipeline overhead at this size.
    out = encoder_forward(state, params)
    out = jax.block_until_ready(out)

    ref = encoder_ref(state, params)
    assert out.shape == (batch, state_emb_dim)
    assert jnp.allclose(out, ref, atol=1e-5, rtol=1e-5), (
        f"max abs err = {jnp.max(jnp.abs(out - ref))}")

    print("KERNEL_OK")
</pallas_src>

<mosaic_0001>
module attributes {stable_mosaic.version = 11 : i64} {
  func.func @_encoder_kernel(%arg0: i32, %arg1: memref<16x17xf32, #tpu.memory_space<vmem>>, %arg2: memref<17x32xf32, #tpu.memory_space<vmem>>, %arg3: memref<1x32xf32, #tpu.memory_space<vmem>>, %arg4: memref<32x32xf32, #tpu.memory_space<vmem>>, %arg5: memref<1x32xf32, #tpu.memory_space<vmem>>, %arg6: memref<32x8xf32, #tpu.memory_space<vmem>>, %arg7: memref<1x8xf32, #tpu.memory_space<vmem>>, %arg8: memref<16x8xf32, #tpu.memory_space<vmem>>) attributes {dimension_semantics = [#tpu.dimension_semantics<parallel>], iteration_bounds = array<i64: 1>, scalar_prefetch = 0 : i64, scratch_operands = 0 : i64, tpu.core_type = #tpu.core_type<tc>, window_params = [{transform_indices = @transform_0, window_bounds = array<i64: 16, 17>}, {pipeline_mode = #tpu.pipeline_mode<synchronous>, transform_indices = @transform_1, window_bounds = array<i64: 17, 32>}, {pipeline_mode = #tpu.pipeline_mode<synchronous>, transform_indices = @transform_2, window_bounds = array<i64: 1, 32>}, {pipeline_mode = #tpu.pipeline_mode<synchronous>, transform_indices = @transform_3, window_bounds = array<i64: 32, 32>}, {pipeline_mode = #tpu.pipeline_mode<synchronous>, transform_indices = @transform_4, window_bounds = array<i64: 1, 32>}, {pipeline_mode = #tpu.pipeline_mode<synchronous>, transform_indices = @transform_5, window_bounds = array<i64: 32, 8>}, {pipeline_mode = #tpu.pipeline_mode<synchronous>, transform_indices = @transform_6, window_bounds = array<i64: 1, 8>}, {transform_indices = @transform_7, window_bounds = array<i64: 16, 8>}]} {
    %c0 = arith.constant 0 : index
    %c0_0 = arith.constant 0 : index
    %0 = vector.load %arg1[%c0, %c0_0] : memref<16x17xf32, #tpu.memory_space<vmem>>, vector<16x17xf32>
    %c0_1 = arith.constant 0 : index
    %c0_2 = arith.constant 0 : index
    %1 = vector.load %arg2[%c0_1, %c0_2] : memref<17x32xf32, #tpu.memory_space<vmem>>, vector<17x32xf32>
    %cst = arith.constant dense<0.000000e+00> : vector<16x32xf32>
    %2 = tpu.matmul %0, %1, %cst {dimension_numbers = #tpu.dot_dimension_numbers<[1], [0], [0], [1], [0, 0, 1, 1], [], []>} : vector<16x17xf32>, vector<17x32xf32>, vector<16x32xf32> -> vector<16x32xf32>
    %c0_3 = arith.constant 0 : index
    %c0_4 = arith.constant 0 : index
    %3 = vector.load %arg3[%c0_3, %c0_4] : memref<1x32xf32, #tpu.memory_space<vmem>>, vector<1x32xf32>
    %4 = vector.broadcast %3 : vector<1x32xf32> to vector<16x32xf32>
    %5 = arith.addf %2, %4 : vector<16x32xf32>
    %6 = math.tanh %5 : vector<16x32xf32>
    %c0_5 = arith.constant 0 : index
    %c0_6 = arith.constant 0 : index
    %7 = vector.load %arg4[%c0_5, %c0_6] : memref<32x32xf32, #tpu.memory_space<vmem>>, vector<32x32xf32>
    %cst_7 = arith.constant dense<0.000000e+00> : vector<16x32xf32>
    %8 = tpu.matmul %6, %7, %cst_7 {dimension_numbers = #tpu.dot_dimension_numbers<[1], [0], [0], [1], [0, 0, 1, 1], [], []>} : vector<16x32xf32>, vector<32x32xf32>, vector<16x32xf32> -> vector<16x32xf32>
    %c0_8 = arith.constant 0 : index
    %c0_9 = arith.constant 0 : index
    %9 = vector.load %arg5[%c0_8, %c0_9] : memref<1x32xf32, #tpu.memory_space<vmem>>, vector<1x32xf32>
    %10 = vector.broadcast %9 : vector<1x32xf32> to vector<16x32xf32>
    %11 = arith.addf %8, %10 : vector<16x32xf32>
    %12 = math.tanh %11 : vector<16x32xf32>
    %c0_10 = arith.constant 0 : index
    %c0_11 = arith.constant 0 : index
    %13 = vector.load %arg6[%c0_10, %c0_11] : memref<32x8xf32, #tpu.memory_space<vmem>>, vector<32x8xf32>
    %cst_12 = arith.constant dense<0.000000e+00> : vector<16x8xf32>
    %14 = tpu.matmul %12, %13, %cst_12 {dimension_numbers = #tpu.dot_dimension_numbers<[1], [0], [0], [1], [0, 0, 1, 1], [], []>} : vector<16x32xf32>, vector<32x8xf32>, vector<16x8xf32> -> vector<16x8xf32>
    %c0_13 = arith.constant 0 : index
    %c0_14 = arith.constant 0 : index
    %15 = vector.load %arg7[%c0_13, %c0_14] : memref<1x8xf32, #tpu.memory_space<vmem>>, vector<1x8xf32>
    %16 = vector.broadcast %15 : vector<1x8xf32> to vector<16x8xf32>
    %17 = arith.addf %14, %16 : vector<16x8xf32>
    %c0_15 = arith.constant 0 : index
    %c0_16 = arith.constant 0 : index
    %18 = vector.load %arg8[%c0_15, %c0_16] : memref<16x8xf32, #tpu.memory_space<vmem>>, vector<16x8xf32>
    tpu.vector_store %arg8[%c0_15, %c0_16], %17 {strides = array<i32>} : memref<16x8xf32, #tpu.memory_space<vmem>>, vector<16x8xf32>,
    return
  }
  func.func @transform_0(%arg0: i32) -> (i32, i32) {
    %c0_i32 = arith.constant 0 : i32
    %c0_i32_0 = arith.constant 0 : i32
    return %arg0, %c0_i32 : i32, i32
  }
  func.func @transform_1(%arg0: i32) -> (i32, i32) {
    %c0_i32 = arith.constant 0 : i32
    %c0_i32_0 = arith.constant 0 : i32
    %c0_i32_1 = arith.constant 0 : i32
    return %c0_i32, %c0_i32_0 : i32, i32
  }
  func.func @transform_2(%arg0: i32) -> (i32, i32) {
    %c0_i32 = arith.constant 0 : i32
    %c0_i32_0 = arith.constant 0 : i32
    %c0_i32_1 = arith.constant 0 : i32
    return %c0_i32, %c0_i32_0 : i32, i32
  }
  func.func @transform_3(%arg0: i32) -> (i32, i32) {
    %c0_i32 = arith.constant 0 : i32
    %c0_i32_0 = arith.constant 0 : i32
    %c0_i32_1 = arith.constant 0 : i32
    return %c0_i32, %c0_i32_0 : i32, i32
  }
  func.func @transform_4(%arg0: i32) -> (i32, i32) {
    %c0_i32 = arith.constant 0 : i32
    %c0_i32_0 = arith.constant 0 : i32
    %c0_i32_1 = arith.constant 0 : i32
    return %c0_i32, %c0_i32_0 : i32, i32
  }
  func.func @transform_5(%arg0: i32) -> (i32, i32) {
    %c0_i32 = arith.constant 0 : i32
    %c0_i32_0 = arith.constant 0 : i32
    %c0_i32_1 = arith.constant 0 : i32
    return %c0_i32, %c0_i32_0 : i32, i32
  }
  func.func @transform_6(%arg0: i32) -> (i32, i32) {
    %c0_i32 = arith.constant 0 : i32
    %c0_i32_0 = arith.constant 0 : i32
    %c0_i32_1 = arith.constant 0 : i32
    return %c0_i32, %c0_i32_0 : i32, i32
  }
  func.func @transform_7(%arg0: i32) -> (i32, i32) {
    %c0_i32 = arith.constant 0 : i32
    %c0_i32_0 = arith.constant 0 : i32
    return %arg0, %c0_i32 : i32, i32
  }
}

</mosaic_0001>

<llo_original>
// kernel: encoder_forward.1
$region0: #{encoder_forward.1}
  #allocation0 [shape = 'u32[]', space=smem, size = 0x4, offset = 0x4, fixed_abs, tag = 'smem constant byte address 0x4 - core index']
  #allocation1 [shape = 'u32[72,128]{1,0:T(1,128)}', space=vmem, size = 0x9000, scoped, tag = 'internal scratch']
  %s0 = inlined_call_operand.hbm [shape: f32[16,17], index: 0, kind: input, shape index: {}]
  %s1 = inlined_call_operand.hbm [shape: f32[17,32], index: 1, kind: input, shape index: {}]
  %s2 = inlined_call_operand.vmem [shape: f32[1,32], index: 2, kind: input, shape index: {}]
  %s3 = inlined_call_operand.vmem [shape: f32[32,32], index: 3, kind: input, shape index: {}]
  %s4 = inlined_call_operand.vmem [shape: f32[1,32], index: 4, kind: input, shape index: {}]
  %s5 = inlined_call_operand.vmem [shape: f32[32,8], index: 5, kind: input, shape index: {}]
  %s6 = inlined_call_operand.vmem [shape: f32[1,8], index: 6, kind: input, shape index: {}]
  %s7 = inlined_call_operand.vmem [shape: f32[16,8], index: 7, kind: output, shape index: {}]
  %s8 = sld [smem:[#allocation0]]
  $region46: #{encoder_forward.1} parent=0
    _
  %s10 = ssub.s32 1, %s8
  %s11 = scalar_select 0, %s10, %s8
  $region1: #{encoder_forward.1} parent=0
    #allocation2 [shape = 'u8[8192]{0}', space=vmem, size = 0x2000, scoped, tag = 'input window, operand 0, single buffered']
    #allocation3 [shape = 's32[1]{0}', space=sflag, size = 0x4, scoped, tag = 'scoped memory for encoder_forward.1']
    #allocation4 [shape = 'u8[12288]{0}', space=vmem, size = 0x3000, scoped, tag = 'input window, operand 1, single buffered']
    #allocation5 [shape = 's32[1]{0}', space=sflag, size = 0x4, scoped, tag = 'scoped memory for encoder_forward.1']
    %12 = vsyncpa [#allocation3], 0
    %13 = vsyncpa [#allocation5], 0
    // Predicated region
    $region2: #{encoder_forward.1} parent=1 // pred_check
      _
    $region3: #{encoder_forward.1} parent=1 // pred_check_branch
      %15 = sbr.rel (0) target = $region5
    $region4: #{encoder_forward.1} parent=1 // pred_region
      %17 = vsyncadd [#allocation3], 0
      %s18 = sshll.u32 %s0, 4
      %s19 = int_to_ptr.hbm [resolvable:$true] %s18
      %s20 = sshll.u32 [#allocation2], 4
      %s21 = int_to_ptr.vmem [resolvable:$true] %s20
      %26 = dma.hbm_to_vmem [thread:$0]  %s19, 256, %s21, [#allocation3], 128, 128, 8
    $region5: #{encoder_forward.1} parent=1 // pred_fallthru
      _
    // Predicated region
    $region6: #{encoder_forward.1} parent=1 // pred_check
      _
    $region7: #{encoder_forward.1} parent=1 // pred_check_branch
      %28 = sbr.rel (0) target = $region9
    $region8: #{encoder_forward.1} parent=1 // pred_region
      %30 = vsyncadd [#allocation5], 0
      %s31 = sshll.u32 %s1, 4
      %s32 = int_to_ptr.hbm [resolvable:$true] %s31
      %s33 = sshll.u32 [#allocation4], 4
      %s34 = int_to_ptr.vmem [resolvable:$true] %s33
      %39 = dma.hbm_to_vmem [thread:$0]  %s32, 384, %s34, [#allocation5], 128, 128, 8
    $region9: #{encoder_forward.1} parent=1 // pred_fallthru
      _
    // Predicated region
    $region10: #{encoder_forward.1} parent=1 // pred_check
      _
    $region11: #{encoder_forward.1} parent=1 // pred_check_branch
      %41 = sbr.rel (0) target = $region13
    $region12: #{encoder_forward.1} parent=1 // pred_region
      _
    $region13: #{encoder_forward.1} parent=1 // pred_fallthru
      _
    // Predicated region
    $region14: #{encoder_forward.1} parent=1 // pred_check
      _
    $region15: #{encoder_forward.1} parent=1 // pred_check_branch
      %43 = sbr.rel (0) target = $region17
    $region16: #{encoder_forward.1} parent=1 // pred_region
      _
    $region17: #{encoder_forward.1} parent=1 // pred_fallthru
      _
    // Predicated region
    $region18: #{encoder_forward.1} parent=1 // pred_check
      _
    $region19: #{encoder_forward.1} parent=1 // pred_check_branch
      %45 = sbr.rel (0) target = $region21
    $region20: #{encoder_forward.1} parent=1 // pred_region
      _
    $region21: #{encoder_forward.1} parent=1 // pred_fallthru
      _
    // Predicated region
    $region22: #{encoder_forward.1} parent=1 // pred_check
      _
    $region23: #{encoder_forward.1} parent=1 // pred_check_branch
      %47 = sbr.rel (0) target = $region25
    $region24: #{encoder_forward.1} parent=1 // pred_region
      _
    $region25: #{encoder_forward.1} parent=1 // pred_fallthru
      _
    // Predicated region
    $region26: #{encoder_forward.1} parent=1 // pred_check
      _
    $region27: #{encoder_forward.1} parent=1 // pred_check_branch
      %49 = sbr.rel (0) target = $region29
    $region28: #{encoder_forward.1} parent=1 // pred_region
      _
    $region29: #{encoder_forward.1} parent=1 // pred_fallthru
      _
    // Predicated region
    $region30: #{encoder_forward.1} parent=1 // pred_check
      _
    $region31: #{encoder_forward.1} parent=1 // pred_check_branch
      %51 = sbr.rel (0) target = $region33
    $region32: #{encoder_forward.1} parent=1 // pred_region
      %53 = dma.done [#allocation3], 256
    $region33: #{encoder_forward.1} parent=1 // pred_fallthru
      _
    // Predicated region
    $region34: #{encoder_forward.1} parent=1 // pred_check
      _
    $region35: #{encoder_forward.1} parent=1 // pred_check_branch
      %55 = sbr.rel (0) target = $region37
    $region36: #{encoder_forward.1} parent=1 // pred_region
      %57 = dma.done [#allocation5], 384
    $region37: #{encoder_forward.1} parent=1 // pred_fallthru
      _
    %v58 = vld [vmem:[#allocation2] sm:$0xff]
    %v59 = vld [vmem:[#allocation2 + $0x8] sm:$0xff]
    %v60 = vld [vmem:[#allocation4] sm:$0xff]
    %v61 = vld [vmem:[#allocation4 + $0x8] sm:$0xff]
    %v62 = vld [vmem:[#allocation4 + $0x10] sm:$0x1]
    %v63 = vld [vmem:[%s2] sm:$0x1]
    %v65 = vperm.slane %v63, 0
    %vm67 = vcmask 138240
    %v69 = vsel %vm67, %v58, 0
    %v72 = vsel %vm67, %v59, 0
    %vm74 = vcmask 1040384
    %v76 = vsel %vm74, %v62, 0
    %78 = vmatpush.msra.mxu0 0.0
    %79 = vmatpush.msra.mxu0 0.0
    %80 = vmatpush.msra.mxu0 0.0
    %81 = vmatpush.msra.mxu0 0.0
    %82 = vmatpush.msra.mxu0 0.0
    %83 = vmatpush.msra.mxu0 0.0
    %84 = vmatpush.msra.mxu0 0.0
    %85 = vmatpush.msra.mxu0 0.0
    %86 = vmatpush.msra.mxu0 0.0
    %87 = vmatpush.msra.mxu0 0.0
    %88 = vmatpush.msra.mxu0 0.0
    %89 = vmatpush.msra.mxu0 0.0
    %90 = vmatpush.msra.mxu0 0.0
    %91 = vmatpush.msra.mxu0 %v76
    %92 = vmatpush.msra.mxu0 %v61
    %93 = vmatpush.msra.mxu0 %v60
    %94 = vmatmul.f32.gmra.mxu0 %v69
    %v95 = vpop.f32.mrf.mxu0
    %v96 = vadd.f32 %v65, %v95
    %97 = vmatmul.f32.gmra.mxu0 %v72
    %v98 = vpop.f32.mrf.mxu0
    %v99 = vadd.f32 %v65, %v98
    %100 = vdwg.mxu0
    %v101 = vtanh.pop %v96
    %v102 = vtanh.pop %v99
    %v103 = vld [vmem:[%s3] sm:$0xff]
    %v104 = vld [vmem:[%s3 + $0x8] sm:$0xff]
    %v105 = vld [vmem:[%s3 + $0x10] sm:$0xff]
    %v106 = vld [vmem:[%s3 + $0x18] sm:$0xff]
    %v107 = vld [vmem:[%s4] sm:$0x1]
    %v109 = vperm.slane %v107, 0
    %vm111 = vcmask 261120
    %v113 = vsel %vm111, %v101, 0
    %v116 = vsel %vm111, %v102, 0
    %118 = vmatpush.msra.mxu0 0.0
    %119 = vmatpush.msra.mxu0 0.0
    %120 = vmatpush.msra.mxu0 0.0
    %121 = vmatpush.msra.mxu0 0.0
    %122 = vmatpush.msra.mxu0 0.0
    %123 = vmatpush.msra.mxu0 0.0
    %124 = vmatpush.msra.mxu0 0.0
    %125 = vmatpush.msra.mxu0 0.0
    %126 = vmatpush.msra.mxu0 0.0
    %127 = vmatpush.msra.mxu0 0.0
    %128 = vmatpush.msra.mxu0 0.0
    %129 = vmatpush.msra.mxu0 0.0
    %130 = vmatpush.msra.mxu0 %v106
    %131 = vmatpush.msra.mxu0 %v105
    %132 = vmatpush.msra.mxu0 %v104
    %133 = vmatpush.msra.mxu0 %v103
    %134 = vmatmul.f32.gmra.mxu0 %v113
    %v135 = vpop.f32.mrf.mxu0
    %v136 = vadd.f32 %v109, %v135
    %137 = vmatmul.f32.gmra.mxu0 %v116
    %v138 = vpop.f32.mrf.mxu0
    %v139 = vadd.f32 %v109, %v138
    %140 = vdwg.mxu0
    %v141 = vtanh.pop %v136
    %v142 = vtanh.pop %v139
    %v143 = vld [vmem:[%s5] sm:$0xff]
    %v144 = vld [vmem:[%s5 + $0x8] sm:$0xff]
    %v145 = vld [vmem:[%s5 + $0x10] sm:$0xff]
    %v146 = vld [vmem:[%s5 + $0x18] sm:$0xff]
    %v147 = vld [vmem:[%s6] sm:$0x1]
    %v149 = vperm.slane %v147, 0
    %v152 = vsel %vm111, %v141, 0
    %v155 = vsel %vm111, %v142, 0
    %157 = vmatpush.msra.mxu0 0.0
    %158 = vmatpush.msra.mxu0 0.0
    %159 = vmatpush.msra.mxu0 0.0
    %160 = vmatpush.msra.mxu0 0.0
    %161 = vmatpush.msra.mxu0 0.0
    %162 = vmatpush.msra.mxu0 0.0
    %163 = vmatpush.msra.mxu0 0.0
    %164 = vmatpush.msra.mxu0 0.0
    %165 = vmatpush.msra.mxu0 0.0
    %166 = vmatpush.msra.mxu0 0.0
    %167 = vmatpush.msra.mxu0 0.0
    %168 = vmatpush.msra.mxu0 0.0
    %169 = vmatpush.msra.mxu0 %v146
    %170 = vmatpush.msra.mxu0 %v145
    %171 = vmatpush.msra.mxu0 %v144
    %172 = vmatpush.msra.mxu0 %v143
    %173 = vmatmul.f32.gmra.mxu0 %v152
    %v174 = vpop.f32.mrf.mxu0
    %v175 = vadd.f32 %v149, %v174
    %176 = vmatmul.f32.gmra.mxu0 %v155
    %v177 = vpop.f32.mrf.mxu0
    %v178 = vadd.f32 %v149, %v177
    %179 = vdwg.mxu0
    %vm180 = vcmask 64512
    %181 = vst.msk [vmem:[%s7] sm:$0xff] %vm180, %v175
    %182 = vst.msk [vmem:[%s7 + $0x8] sm:$0xff] %vm180, %v178
    // Predicated region
    $region38: #{encoder_forward.1} parent=1 // pred_check
      _
    $region39: #{encoder_forward.1} parent=1 // pred_check_branch
      %184 = sbr.rel (0) target = $region41
    $region40: #{encoder_forward.1} parent=1 // pred_region
      _
    $region41: #{encoder_forward.1} parent=1 // pred_fallthru
      _
    // Predicated region
    $region42: #{encoder_forward.1} parent=1 // pred_check
      _
    $region43: #{encoder_forward.1} parent=1 // pred_check_branch
      %186 = sbr.rel (0) target = $region45
    $region44: #{encoder_forward.1} parent=1 // pred_region
      _
    $region45: #{encoder_forward.1} parent=1 // pred_fallthru
      _
    %187 = vsyncpa [#allocation3], 1
    %188 = vsyncpa [#allocation5], 1

</llo_original>
